<compile_context>
chip_gen: v7x
topology: tpu7x:2x2x1
jax: 0.10.0
libtpu: 0.0.40
codegen_flags: <defaults>
</compile_context>

<pallas_src>
import functools

import jax
import jax.numpy as jnp
from jax.experimental import pallas as pl
from jax.experimental.pallas import tpu as pltpu


def _downsample_doubleconv_kernel(x_ref, cmask_ref, rowid_ref,
                                  w1_ref, b1_ref, w2_ref, b2_ref, o_ref,
                                  *, Hp, Wp, tile_rows):
    """One (batch, row-tile) grid step: fused DoubleConv on a haloed slab.

    x_ref    : (1, 1, Cin, L)      bf16 pooled slab, L = (tile_rows+4)*Wp
                                   (2 halo rows above/below, flattened on lanes)
    cmask_ref: (2, L)              f32 column-edge validity masks (dx=-1, dx=+1)
    rowid_ref: (1, L)              i32 slab-row index of every lane
    w1_ref   : (Cmid, 9*Cin)       bf16, K ordered tap-major (tap = (dy+1)*3+(dx+1))
    b1_ref   : (Cmid, 1)           f32
    w2_ref   : (Cout, 9*Cmid)      bf16
    b2_ref   : (Cout, 1)           f32
    o_ref    : (1, Cout, tile_rows*Wp)  output tile (core rows only)
    """
    R = tile_rows + 4
    L = R * Wp
    core_lo = 2 * Wp
    core_sz = tile_rows * Wp
    t = pl.program_id(1)

    cm = cmask_ref[...]
    m_neg = cm[0:1, :]          # source column x-1 is inside the image
    m_pos = cm[1:2, :]          # source column x+1 is inside the image

    def stacked_taps(src, lo, sz):
        # Build the (9*C, sz) K-stacked tap tensor: taps via pltpu.roll (XLU),
        # column-edge wrap zeroed with an f32 multiply.  Vertical padding is
        # already real zero rows in the slab; wrap-contaminated slab rows only
        # reach outputs that are discarded, so no row masks are needed.
        parts = []
        for dy in (-1, 0, 1):
            for dx in (-1, 0, 1):
                off = dy * Wp + dx                      # shifted[i] = src[i+off]
                sh = src if off == 0 else pltpu.roll(src, shift=(-off) % L, axis=1)
                if dx == -1:
                    sh = sh * m_neg
                elif dx == 1:
                    sh = sh * m_pos
                if (lo, sz) != (0, L):
                    sh = sh[:, lo:lo + sz]
                parts.append(sh)
        return jnp.concatenate(parts, axis=0)

    # Taps are built in f32 for lowering robustness (bf16 is recovered exactly);
    # the MXU sees bf16 operands with f32 accumulation.
    slab = x_ref[0, 0].astype(jnp.float32)                         # (Cin, L)

    # conv1 over the whole slab (mid needed on halo rows too): one fat matmul.
    acc1 = jnp.dot(w1_ref[...],
                   stacked_taps(slab, 0, L).astype(jnp.bfloat16),
                   preferred_element_type=jnp.float32)
    mid = jnp.maximum(acc1 + b1_ref[...], 0.0)                     # (Cmid, L) f32

    # conv2's zero padding is zeros of *mid* (not conv1 of zero input):
    # zero the mid rows that fall outside the image (only boundary tiles).
    img_row = t * tile_rows + rowid_ref[...] - 2                   # (1, L) i32
    mid = jnp.where((img_row >= 0) & (img_row < Hp), mid, 0.0)

    # conv2 only on the tile's core rows (drop the 2-row halo each side).
    acc2 = jnp.dot(w2_ref[...],
                   stacked_taps(mid, core_lo, core_sz).astype(jnp.bfloat16),
                   preferred_element_type=jnp.float32)
    out = jnp.maximum(acc2 + b2_ref[...], 0.0)                     # (Cout, core)
    o_ref[0] = out.astype(o_ref.dtype)


def _pick_tile_rows(Hp, Wp, max_tile_lanes=4096):
    """Largest divisor of Hp with a lane-aligned (%128) tile under the budget."""
    best = Hp
    for d in range(1, Hp + 1):
        if Hp % d == 0 and d * Wp <= max_tile_lanes and (d * Wp) % 128 == 0:
            best = d
    return best


def init_params(key, in_channels, out_channels):
    """DoubleConv(in, out) params, mid = out.  Weights tap-major (9, Cout, Cin)
    with tap = ky*3 + kx (PyTorch (Cout,Cin,3,3) -> .reshape(Co,Ci,9).transpose(2,0,1))."""
    mid = out_channels
    k1, k2, k3, k4 = jax.random.split(key, 4)
    s1 = 1.0 / (in_channels * 9) ** 0.5
    s2 = 1.0 / (mid * 9) ** 0.5
    return {
        "w1": jax.random.uniform(k1, (9, mid, in_channels), jnp.float32, -s1, s1),
        "b1": jax.random.uniform(k2, (mid, 1), jnp.float32, -s1, s1),
        "w2": jax.random.uniform(k3, (9, out_channels, mid), jnp.float32, -s2, s2),
        "b2": jax.random.uniform(k4, (out_channels, 1), jnp.float32, -s2, s2),
    }


def downsample_forward(params, x, *, tile_rows=None):
    """DownSample.forward.  x in NCHW (PyTorch convention); returns NCHW."""
    N, Cin, H, W = x.shape
    Hp, Wp = H // 2, W // 2
    Cmid = params["w1"].shape[1]
    Cout = params["w2"].shape[1]

    if tile_rows is None:
        tile_rows = _pick_tile_rows(Hp, Wp)
    tile_rows = int(max(1, min(tile_rows, Hp)))
    if Hp % tile_rows != 0 or (tile_rows != Hp and (tile_rows * Wp) % 128 != 0):
        tile_rows = Hp                        # fall back to one full-image tile
    T = Hp // tile_rows
    R = tile_rows + 4                         # 2-row halo on each side
    L = R * Wp
    core_L = tile_rows * Wp

    # ---- MaxPool2d(2) + halo-slab gather: one fused XLA pass, bf16 output ----
    # TODO(synk): fuse the 2x2 max-pool into the Pallas kernel to remove this
    #             extra HBM pass on bandwidth-bound early layers.
    xp = x[:, :, :Hp * 2, :Wp * 2].reshape(N, Cin, Hp, 2, Wp, 2).max(axis=(3, 5))
    xp = xp.astype(jnp.bfloat16)
    xp_pad = jnp.pad(xp, ((0, 0), (0, 0), (2, 2), (0, 0)))          # zero halo rows
    x_tiles = jnp.stack(
        [xp_pad[:, :, t * tile_rows: t * tile_rows + R, :] for t in range(T)],
        axis=1).reshape(N, T, Cin, L)

    # ---- tiny constant tensors: column-edge masks and slab-row indices ----
    col = jnp.arange(Wp, dtype=jnp.int32)
    m_neg = (col >= 1).astype(jnp.float32)
    m_pos = (col <= Wp - 2).astype(jnp.float32)
    cmask = jnp.stack([jnp.tile(m_neg, R), jnp.tile(m_pos, R)], axis=0)   # (2, L)
    rowid = jnp.repeat(jnp.arange(R, dtype=jnp.int32), Wp).reshape(1, L)

    # ---- weights: tap-major (9, Co, Ci) -> (Co, 9*Ci) bf16, K = tap*Ci + ci ----
    w1f = jnp.transpose(params["w1"], (1, 0, 2)).reshape(Cmid, 9 * Cin).astype(jnp.bfloat16)
    w2f = jnp.transpose(params["w2"], (1, 0, 2)).reshape(Cout, 9 * Cmid).astype(jnp.bfloat16)
    b1 = params["b1"].astype(jnp.float32)
    b2 = params["b2"].astype(jnp.float32)

    kernel = functools.partial(_downsample_doubleconv_kernel,
                               Hp=Hp, Wp=Wp, tile_rows=tile_rows)

    flops = 2 * N * T * (Cmid * 9 * Cin * L + Cout * 9 * Cmid * core_L)
    bytes_accessed = (x_tiles.size * 2 + w1f.size * 2 + w2f.size * 2 +
                      (b1.size + b2.size + cmask.size + rowid.size) * 4 +
                      N * Cout * Hp * Wp * 4)

    out = pl.pallas_call(
        kernel,
        out_shape=jax.ShapeDtypeStruct((N, Cout, Hp * Wp), x.dtype),
        grid_spec=pltpu.PrefetchScalarGridSpec(
            num_scalar_prefetch=0,
            grid=(N, T),
            in_specs=[
                pl.BlockSpec((1, 1, Cin, L), lambda n, t: (n, t, 0, 0)),
                pl.BlockSpec((2, L), lambda n, t: (0, 0)),
                pl.BlockSpec((1, L), lambda n, t: (0, 0)),
                pl.BlockSpec((Cmid, 9 * Cin), lambda n, t: (0, 0)),
                pl.BlockSpec((Cmid, 1), lambda n, t: (0, 0)),
                pl.BlockSpec((Cout, 9 * Cmid), lambda n, t: (0, 0)),
                pl.BlockSpec((Cout, 1), lambda n, t: (0, 0)),
            ],
            out_specs=pl.BlockSpec((1, Cout, core_L), lambda n, t: (n, 0, t)),
        ),
        compiler_params=pltpu.CompilerParams(
            dimension_semantics=("parallel", "parallel"),
            vmem_limit_bytes=48 * 1024 * 1024),
        cost_estimate=pl.CostEstimate(flops=flops, transcendentals=0,
                                      bytes_accessed=bytes_accessed),
    )(x_tiles, cmask, rowid, w1f, b1, w2f, b2)

    # (N, Cout, Hp*Wp) -> (N, Cout, Hp, Wp): pure reshape, already NCHW.
    return out.reshape(N, Cout, Hp, Wp)


def reference_forward(params, x):
    """Pure-XLA reference (PyTorch cross-correlation semantics), with the same
    bf16 rounding of inputs/weights the kernel applies, f32 math otherwise."""
    N, Cin, H, W = x.shape
    Hp, Wp = H // 2, W // 2
    xp = x[:, :, :Hp * 2, :Wp * 2].reshape(N, Cin, Hp, 2, Wp, 2).max(axis=(3, 5))
    xp = xp.astype(jnp.bfloat16).astype(jnp.float32)

    def conv_relu(inp, w_tap, b):
        C_out = w_tap.shape[1]
        w = jnp.transpose(w_tap, (1, 2, 0)).reshape(C_out, w_tap.shape[2], 3, 3)
        w = w.astype(jnp.bfloat16).astype(jnp.float32)
        y = jax.lax.conv_general_dilated(
            inp, w, window_strides=(1, 1), padding="SAME",
            dimension_numbers=("NCHW", "OIHW", "NCHW"))
        return jnp.maximum(y + b.reshape(1, C_out, 1, 1), 0.0)

    mid = conv_relu(xp, params["w1"], params["b1"])
    return conv_relu(mid, params["w2"], params["b2"])


if __name__ == "__main__":
    in_channels = 4
    out_channels = 8
    N, H, W = 2, 32, 32          # pooled 16x16, tile_rows=8 -> 2 row tiles of 128 lanes

    key = jax.random.PRNGKey(0)
    kp, kx = jax.random.split(key)
    params = init_params(kp, in_channels, out_channels)
    x = jax.random.normal(kx, (N, in_channels, H, W), jnp.float32)

    fwd = jax.jit(functools.partial(downsample_forward, tile_rows=8))
    out = fwd(params, x)
    jax.block_until_ready(out)
    assert out.shape == (N, out_channels, H // 2, W // 2), out.shape

    ref = reference_forward(params, x)
    err = float(jnp.max(jnp.abs(out - ref)))
    assert err < 5e-2, f"max abs error vs reference: {err}"

    print("KERNEL_OK")
</pallas_src>

<mosaic_0001>
module attributes {stable_mosaic.version = 11 : i64} {
  func.func @_downsample_doubleconv_kernel(%arg0: i32, %arg1: i32, %arg2: memref<1x1x4x192xbf16, #tpu.memory_space<vmem>>, %arg3: memref<2x192xf32, #tpu.memory_space<vmem>>, %arg4: memref<1x192xi32, #tpu.memory_space<vmem>>, %arg5: memref<8x36xbf16, #tpu.memory_space<vmem>>, %arg6: memref<8x1xf32, #tpu.memory_space<vmem>>, %arg7: memref<8x72xbf16, #tpu.memory_space<vmem>>, %arg8: memref<8x1xf32, #tpu.memory_space<vmem>>, %arg9: memref<1x8x128xf32, #tpu.memory_space<vmem>>) attributes {dimension_semantics = [#tpu.dimension_semantics<parallel>, #tpu.dimension_semantics<parallel>], iteration_bounds = array<i64: 2, 2>, scalar_prefetch = 0 : i64, scratch_operands = 0 : i64, tpu.core_type = #tpu.core_type<tc>, window_params = [{transform_indices = @transform_0, window_bounds = array<i64: 1, 1, 4, 192>}, {pipeline_mode = #tpu.pipeline_mode<synchronous>, transform_indices = @transform_1, window_bounds = array<i64: 2, 192>}, {pipeline_mode = #tpu.pipeline_mode<synchronous>, transform_indices = @transform_2, window_bounds = array<i64: 1, 192>}, {pipeline_mode = #tpu.pipeline_mode<synchronous>, transform_indices = @transform_3, window_bounds = array<i64: 8, 36>}, {pipeline_mode = #tpu.pipeline_mode<synchronous>, transform_indices = @transform_4, window_bounds = array<i64: 8, 1>}, {pipeline_mode = #tpu.pipeline_mode<synchronous>, transform_indices = @transform_5, window_bounds = array<i64: 8, 72>}, {pipeline_mode = #tpu.pipeline_mode<synchronous>, transform_indices = @transform_6, window_bounds = array<i64: 8, 1>}, {transform_indices = @transform_7, window_bounds = array<i64: 1, 8, 128>}]} {
    %c0 = arith.constant 0 : index
    %c0_0 = arith.constant 0 : index
    %0 = vector.load %arg3[%c0, %c0_0] : memref<2x192xf32, #tpu.memory_space<vmem>>, vector<2x192xf32>
    %1 = vector.extract_strided_slice %0 {offsets = [0, 0], sizes = [1, 192], strides = [1, 1]} : vector<2x192xf32> to vector<1x192xf32>
    %2 = vector.extract_strided_slice %0 {offsets = [1, 0], sizes = [1, 192], strides = [1, 1]} : vector<2x192xf32> to vector<1x192xf32>
    %c0_1 = arith.constant 0 : index
    %c0_2 = arith.constant 0 : index
    %c0_3 = arith.constant 0 : index
    %c0_4 = arith.constant 0 : index
    %3 = vector.load %arg2[%c0_1, %c0_2, %c0_3, %c0_4] : memref<1x1x4x192xbf16, #tpu.memory_space<vmem>>, vector<1x1x4x192xbf16>
    %4 = vector.shape_cast %3 : vector<1x1x4x192xbf16> to vector<4x192xbf16>
    %5 = arith.extf %4 : vector<4x192xbf16> to vector<4x192xf32>
    %c0_5 = arith.constant 0 : index
    %c0_6 = arith.constant 0 : index
    %6 = vector.load %arg5[%c0_5, %c0_6] : memref<8x36xbf16, #tpu.memory_space<vmem>>, vector<8x36xbf16>
    %c17_i32 = arith.constant 17 : i32
    %7 = tpu.dynamic_rotate %5 by %c17_i32 dim 1 : vector<4x192xf32>, i32 -> vector<4x192xf32>
    %8 = vector.broadcast %1 : vector<1x192xf32> to vector<4x192xf32>
    %9 = arith.mulf %7, %8 : vector<4x192xf32>
    %c16_i32 = arith.constant 16 : i32
    %10 = tpu.dynamic_rotate %5 by %c16_i32 dim 1 : vector<4x192xf32>, i32 -> vector<4x192xf32>
    %c15_i32 = arith.constant 15 : i32
    %11 = tpu.dynamic_rotate %5 by %c15_i32 dim 1 : vector<4x192xf32>, i32 -> vector<4x192xf32>
    %12 = vector.broadcast %2 : vector<1x192xf32> to vector<4x192xf32>
    %13 = arith.mulf %11, %12 : vector<4x192xf32>
    %c1_i32 = arith.constant 1 : i32
    %14 = tpu.dynamic_rotate %5 by %c1_i32 dim 1 : vector<4x192xf32>, i32 -> vector<4x192xf32>
    %15 = vector.broadcast %1 : vector<1x192xf32> to vector<4x192xf32>
    %16 = arith.mulf %14, %15 : vector<4x192xf32>
    %c191_i32 = arith.constant 191 : i32
    %17 = tpu.dynamic_rotate %5 by %c191_i32 dim 1 : vector<4x192xf32>, i32 -> vector<4x192xf32>
    %18 = vector.broadcast %2 : vector<1x192xf32> to vector<4x192xf32>
    %19 = arith.mulf %17, %18 : vector<4x192xf32>
    %c177_i32 = arith.constant 177 : i32
    %20 = tpu.dynamic_rotate %5 by %c177_i32 dim 1 : vector<4x192xf32>, i32 -> vector<4x192xf32>
    %21 = vector.broadcast %1 : vector<1x192xf32> to vector<4x192xf32>
    %22 = arith.mulf %20, %21 : vector<4x192xf32>
    %c176_i32 = arith.constant 176 : i32
    %23 = tpu.dynamic_rotate %5 by %c176_i32 dim 1 : vector<4x192xf32>, i32 -> vector<4x192xf32>
    %c175_i32 = arith.constant 175 : i32
    %24 = tpu.dynamic_rotate %5 by %c175_i32 dim 1 : vector<4x192xf32>, i32 -> vector<4x192xf32>
    %25 = vector.broadcast %2 : vector<1x192xf32> to vector<4x192xf32>
    %26 = arith.mulf %24, %25 : vector<4x192xf32>
    %27 = tpu.concatenate %9, %10, %13, %16, %5, %19, %22, %23, %26 in 0 : vector<4x192xf32>, vector<4x192xf32>, vector<4x192xf32>, vector<4x192xf32>, vector<4x192xf32>, vector<4x192xf32>, vector<4x192xf32>, vector<4x192xf32>, vector<4x192xf32> -> vector<36x192xf32>
    %28 = arith.truncf %27 : vector<36x192xf32> to vector<36x192xbf16>
    %cst = arith.constant dense<0.000000e+00> : vector<8x192xf32>
    %29 = tpu.matmul %6, %28, %cst {dimension_numbers = #tpu.dot_dimension_numbers<[1], [0], [0], [1], [0, 0, 1, 1], [], []>} : vector<8x36xbf16>, vector<36x192xbf16>, vector<8x192xf32> -> vector<8x192xf32>
    %c0_7 = arith.constant 0 : index
    %c0_8 = arith.constant 0 : index
    %30 = vector.load %arg6[%c0_7, %c0_8] : memref<8x1xf32, #tpu.memory_space<vmem>>, vector<8x1xf32>
    %31 = vector.broadcast %30 : vector<8x1xf32> to vector<8x192xf32>
    %32 = arith.addf %29, %31 : vector<8x192xf32>
    %cst_9 = arith.constant 0.000000e+00 : f32
    %33 = vector.broadcast %cst_9 : f32 to vector<8x192xf32>
    %34 = arith.maximumf %32, %33 : vector<8x192xf32>
    %c8_i32 = arith.constant 8 : i32
    %35 = arith.muli %arg1, %c8_i32 : i32
    %c0_10 = arith.constant 0 : index
    %c0_11 = arith.constant 0 : index
    %36 = vector.load %arg4[%c0_10, %c0_11] : memref<1x192xi32, #tpu.memory_space<vmem>>, vector<1x192xi32>
    %37 = vector.broadcast %35 : i32 to vector<1x192xi32>
    %38 = arith.addi %37, %36 : vector<1x192xi32>
    %c2_i32 = arith.constant 2 : i32
    %39 = vector.broadcast %c2_i32 : i32 to vector<1x192xi32>
    %40 = arith.subi %38, %39 : vector<1x192xi32>
    %c0_i32 = arith.constant 0 : i32
    %41 = vector.broadcast %c0_i32 : i32 to vector<1x192xi32>
    %42 = arith.cmpi sge, %40, %41 : vector<1x192xi32>
    %c16_i32_12 = arith.constant 16 : i32
    %43 = vector.broadcast %c16_i32_12 : i32 to vector<1x192xi32>
    %44 = arith.cmpi slt, %40, %43 : vector<1x192xi32>
    %45 = arith.andi %42, %44 : vector<1x192xi1>
    %cst_13 = arith.constant 0.000000e+00 : f32
    %46 = vector.shape_cast %45 : vector<1x192xi1> to vector<1x192xi1>
    %47 = vector.broadcast %46 : vector<1x192xi1> to vector<8x192xi1>
    %48 = vector.broadcast %cst_13 : f32 to vector<8x192xf32>
    %49 = arith.select %47, %34, %48 : vector<8x192xi1>, vector<8x192xf32>
    %c0_14 = arith.constant 0 : index
    %c0_15 = arith.constant 0 : index
    %50 = vector.load %arg7[%c0_14, %c0_15] : memref<8x72xbf16, #tpu.memory_space<vmem>>, vector<8x72xbf16>
    %c17_i32_16 = arith.constant 17 : i32
    %51 = tpu.dynamic_rotate %49 by %c17_i32_16 dim 1 : vector<8x192xf32>, i32 -> vector<8x192xf32>
    %52 = vector.broadcast %1 : vector<1x192xf32> to vector<8x192xf32>
    %53 = arith.mulf %51, %52 : vector<8x192xf32>
    %54 = vector.extract_strided_slice %53 {offsets = [0, 32], sizes = [8, 128], strides = [1, 1]} : vector<8x192xf32> to vector<8x128xf32>
    %c16_i32_17 = arith.constant 16 : i32
    %55 = tpu.dynamic_rotate %49 by %c16_i32_17 dim 1 : vector<8x192xf32>, i32 -> vector<8x192xf32>
    %56 = vector.extract_strided_slice %55 {offsets = [0, 32], sizes = [8, 128], strides = [1, 1]} : vector<8x192xf32> to vector<8x128xf32>
    %c15_i32_18 = arith.constant 15 : i32
    %57 = tpu.dynamic_rotate %49 by %c15_i32_18 dim 1 : vector<8x192xf32>, i32 -> vector<8x192xf32>
    %58 = vector.broadcast %2 : vector<1x192xf32> to vector<8x192xf32>
    %59 = arith.mulf %57, %58 : vector<8x192xf32>
    %60 = vector.extract_strided_slice %59 {offsets = [0, 32], sizes = [8, 128], strides = [1, 1]} : vector<8x192xf32> to vector<8x128xf32>
    %c1_i32_19 = arith.constant 1 : i32
    %61 = tpu.dynamic_rotate %49 by %c1_i32_19 dim 1 : vector<8x192xf32>, i32 -> vector<8x192xf32>
    %62 = vector.broadcast %1 : vector<1x192xf32> to vector<8x192xf32>
    %63 = arith.mulf %61, %62 : vector<8x192xf32>
    %64 = vector.extract_strided_slice %63 {offsets = [0, 32], sizes = [8, 128], strides = [1, 1]} : vector<8x192xf32> to vector<8x128xf32>
    %65 = vector.extract_strided_slice %49 {offsets = [0, 32], sizes = [8, 128], strides = [1, 1]} : vector<8x192xf32> to vector<8x128xf32>
    %c191_i32_20 = arith.constant 191 : i32
    %66 = tpu.dynamic_rotate %49 by %c191_i32_20 dim 1 : vector<8x192xf32>, i32 -> vector<8x192xf32>
    %67 = vector.broadcast %2 : vector<1x192xf32> to vector<8x192xf32>
    %68 = arith.mulf %66, %67 : vector<8x192xf32>
    %69 = vector.extract_strided_slice %68 {offsets = [0, 32], sizes = [8, 128], strides = [1, 1]} : vector<8x192xf32> to vector<8x128xf32>
    %c177_i32_21 = arith.constant 177 : i32
    %70 = tpu.dynamic_rotate %49 by %c177_i32_21 dim 1 : vector<8x192xf32>, i32 -> vector<8x192xf32>
    %71 = vector.broadcast %1 : vector<1x192xf32> to vector<8x192xf32>
    %72 = arith.mulf %70, %71 : vector<8x192xf32>
    %73 = vector.extract_strided_slice %72 {offsets = [0, 32], sizes = [8, 128], strides = [1, 1]} : vector<8x192xf32> to vector<8x128xf32>
    %c176_i32_22 = arith.constant 176 : i32
    %74 = tpu.dynamic_rotate %49 by %c176_i32_22 dim 1 : vector<8x192xf32>, i32 -> vector<8x192xf32>
    %75 = vector.extract_strided_slice %74 {offsets = [0, 32], sizes = [8, 128], strides = [1, 1]} : vector<8x192xf32> to vector<8x128xf32>
    %c175_i32_23 = arith.constant 175 : i32
    %76 = tpu.dynamic_rotate %49 by %c175_i32_23 dim 1 : vector<8x192xf32>, i32 -> vector<8x192xf32>
    %77 = vector.broadcast %2 : vector<1x192xf32> to vector<8x192xf32>
    %78 = arith.mulf %76, %77 : vector<8x192xf32>
    %79 = vector.extract_strided_slice %78 {offsets = [0, 32], sizes = [8, 128], strides = [1, 1]} : vector<8x192xf32> to vector<8x128xf32>
    %80 = tpu.concatenate %54, %56, %60, %64, %65, %69, %73, %75, %79 in 0 : vector<8x128xf32>, vector<8x128xf32>, vector<8x128xf32>, vector<8x128xf32>, vector<8x128xf32>, vector<8x128xf32>, vector<8x128xf32>, vector<8x128xf32>, vector<8x128xf32> -> vector<72x128xf32>
    %81 = arith.truncf %80 : vector<72x128xf32> to vector<72x128xbf16>
    %cst_24 = arith.constant dense<0.000000e+00> : vector<8x128xf32>
    %82 = tpu.matmul %50, %81, %cst_24 {dimension_numbers = #tpu.dot_dimension_numbers<[1], [0], [0], [1], [0, 0, 1, 1], [], []>} : vector<8x72xbf16>, vector<72x128xbf16>, vector<8x128xf32> -> vector<8x128xf32>
    %c0_25 = arith.constant 0 : index
    %c0_26 = arith.constant 0 : index
    %83 = vector.load %arg8[%c0_25, %c0_26] : memref<8x1xf32, #tpu.memory_space<vmem>>, vector<8x1xf32>
    %84 = vector.broadcast %83 : vector<8x1xf32> to vector<8x128xf32>
    %85 = arith.addf %82, %84 : vector<8x128xf32>
    %cst_27 = arith.constant 0.000000e+00 : f32
    %86 = vector.broadcast %cst_27 : f32 to vector<8x128xf32>
    %87 = arith.maximumf %85, %86 : vector<8x128xf32>
    %c0_28 = arith.constant 0 : index
    %c0_29 = arith.constant 0 : index
    %c0_30 = arith.constant 0 : index
    %88 = vector.load %arg9[%c0_28, %c0_29, %c0_30] : memref<1x8x128xf32, #tpu.memory_space<vmem>>, vector<1x8x128xf32>
    %89 = vector.shape_cast %88 : vector<1x8x128xf32> to vector<8x128xf32>
    %90 = vector.shape_cast %87 : vector<8x128xf32> to vector<1x8x128xf32>
    tpu.vector_store %arg9[%c0_28, %c0_29, %c0_30], %90 {strides = array<i32>} : memref<1x8x128xf32, #tpu.memory_space<vmem>>, vector<1x8x128xf32>,
    return
  }
  func.func @transform_0(%arg0: i32, %arg1: i32) -> (i32, i32, i32, i32) {
    %c0_i32 = arith.constant 0 : i32
    %c0_i32_0 = arith.constant 0 : i32
    %c0_i32_1 = arith.constant 0 : i32
    return %arg0, %arg1, %c0_i32, %c0_i32_0 : i32, i32, i32, i32
  }
  func.func @transform_1(%arg0: i32, %arg1: i32) -> (i32, i32) {
    %c0_i32 = arith.constant 0 : i32
    %c0_i32_0 = arith.constant 0 : i32
    %c0_i32_1 = arith.constant 0 : i32
    return %c0_i32, %c0_i32_0 : i32, i32
  }
  func.func @transform_2(%arg0: i32, %arg1: i32) -> (i32, i32) {
    %c0_i32 = arith.constant 0 : i32
    %c0_i32_0 = arith.constant 0 : i32
    %c0_i32_1 = arith.constant 0 : i32
    return %c0_i32, %c0_i32_0 : i32, i32
  }
  func.func @transform_3(%arg0: i32, %arg1: i32) -> (i32, i32) {
    %c0_i32 = arith.constant 0 : i32
    %c0_i32_0 = arith.constant 0 : i32
    %c0_i32_1 = arith.constant 0 : i32
    return %c0_i32, %c0_i32_0 : i32, i32
  }
  func.func @transform_4(%arg0: i32, %arg1: i32) -> (i32, i32) {
    %c0_i32 = arith.constant 0 : i32
    %c0_i32_0 = arith.constant 0 : i32
    %c0_i32_1 = arith.constant 0 : i32
    return %c0_i32, %c0_i32_0 : i32, i32
  }
  func.func @transform_5(%arg0: i32, %arg1: i32) -> (i32, i32) {
    %c0_i32 = arith.constant 0 : i32
    %c0_i32_0 = arith.constant 0 : i32
    %c0_i32_1 = arith.constant 0 : i32
    return %c0_i32, %c0_i32_0 : i32, i32
  }
  func.func @transform_6(%arg0: i32, %arg1: i32) -> (i32, i32) {
    %c0_i32 = arith.constant 0 : i32
    %c0_i32_0 = arith.constant 0 : i32
    %c0_i32_1 = arith.constant 0 : i32
    return %c0_i32, %c0_i32_0 : i32, i32
  }
  func.func @transform_7(%arg0: i32, %arg1: i32) -> (i32, i32, i32) {
    %c0_i32 = arith.constant 0 : i32
    %c0_i32_0 = arith.constant 0 : i32
    return %arg0, %c0_i32, %arg1 : i32, i32, i32
  }
}

</mosaic_0001>

<llo_original>
// kernel: tile.13
$region0: #{tile.13}
  #allocation0 [shape = 's32[1]{0}', space=sflag, size = 0x4, scoped, tag = 'scoped memory for tile.13']
  %s0 = inlined_call_operand.vmem [shape: f32[16], index: 0, kind: input, shape index: {}]
  %s1 = inlined_call_operand.vmem [shape: f32[12,16], index: 1, kind: output, shape index: {}]
  // Predicated region
  $region2: #{tile.13} parent=0 // pred_check
    _
  $region3: #{tile.13} parent=0 // pred_check_branch
    %3 = sbr.rel (0) target = $region5
  $region4: #{tile.13} parent=0 // pred_region
    _
  $region5: #{tile.13} parent=0 // pred_fallthru
    _
  %v4 = vld [vmem:[%s0] ss:$0 sm:$0xff]
  %5 = vst [vmem:[%s1] sm:$0xff] %v4
  %s6 = scalar_lea.vmem %s1, 8
  %7 = vst [vmem:[%s6] sm:$0xff] %v4

// kernel: tile.18
$region0: #{tile.18}
  %s0 = inlined_call_operand.vmem [shape: f32[12,16], index: 0, kind: input, shape index: {}]
  %s1 = inlined_call_operand.vmem [shape: f32[1,192], index: 1, kind: output, shape index: {}]
  $region1: #{tile.18} parent=0
    #allocation0 [shape = 'u8[8192]{0}', space=vmem, size = 0x2000, scoped, tag = 'scoped mem for output reshape']
    %s2 = smov 3
    %v3 = vld [vmem:[%s0] ss:$8 sm:%s2]
    %vm4 = vcmask 130048
    %5 = vst.msk [vmem:[#allocation0] ss:$8 sm:$0x3] %vm4, %v3
    %s6 = scalar_lea.vmem %s0, 7
    %v7 = vld [vmem:[%s6] sm:$0x1]
    %8 = vrot.lane.b32.xlu0 %v7, 112
    %v9 = vpop.permute.xlu0 %8
    %vm10 = vcmask 1048448
    %11 = vst.msk [vmem:[#allocation0] sm:$0x1] %vm10, %v9
    %s12 = scalar_lea.vmem %s0, 6
    %v13 = vld [vmem:[%s12] sm:$0x1]
    %14 = vrot.lane.b32.xlu0 %v13, 96
    %v15 = vpop.permute.xlu0 %14
    %vm16 = vcmask 917248
    %17 = vst.msk [vmem:[#allocation0] sm:$0x1] %vm16, %v15
    %s18 = scalar_lea.vmem %s0, 5
    %v19 = vld [vmem:[%s18] sm:$0x1]
    %20 = vrot.lane.b32.xlu0 %v19, 80
    %v21 = vpop.permute.xlu0 %20
    %vm22 = vcmask 786048
    %23 = vst.msk [vmem:[#allocation0] sm:$0x1] %vm22, %v21
    %s24 = scalar_lea.vmem %s0, 4
    %v25 = vld [vmem:[%s24] sm:$0x1]
    %26 = vrot.lane.b32.xlu0 %v25, 64
    %v27 = vpop.permute.xlu0 %26
    %vm28 = vcmask 654848
    %29 = vst.msk [vmem:[#allocation0] sm:$0x1] %vm28, %v27
    %s30 = scalar_lea.vmem %s0, 3
    %s31 = smov 3
    %v32 = vld [vmem:[%s30] ss:$8 sm:%s31]
    %33 = vrot.lane.b32.xlu0 %v32, 48
    %v34 = vpop.permute.xlu0 %33
    %vm35 = vcmask 523648
    %36 = vst.msk [vmem:[#allocation0] ss:$8 sm:$0x3] %vm35, %v34
    %s37 = scalar_lea.vmem %s0, 2
    %s38 = smov 3
    %v39 = vld [vmem:[%s37] ss:$8 sm:%s38]
    %40 = vrot.lane.b32.xlu0 %v39, 32
    %v41 = vpop.permute.xlu0 %40
    %vm42 = vcmask 392448
    %43 = vst.msk [vmem:[#allocation0] ss:$8 sm:$0x3] %vm42, %v41
    %s44 = scalar_lea.vmem %s0, 1
    %s45 = smov 3
    %v46 = vld [vmem:[%s44] ss:$8 sm:%s45]
    %47 = vrot.lane.b32.xlu0 %v46, 16
    %v48 = vpop.permute.xlu0 %47
    %vm49 = vcmask 261248
    %50 = vst.msk [vmem:[#allocation0] ss:$8 sm:$0x3] %vm49, %v48
    %s52 = sshllo.u32 0, 1
    %v54 = vld [vmem:[#allocation0] sm:%s52]
    %s55 = sshllo.u32 0, 1
    %56 = vst [vmem:[%s1] sm:%s55] %v54
    %s57 = scalar_lea.vmem [#allocation0], 8
    %v58 = vld [vmem:[%s57] sm:%s52]
    %s59 = sshllo.u32 0, 1
    %s60 = scalar_lea.vmem %s1, 1
    %61 = vst [vmem:[%s60] sm:%s59] %v58

// kernel: downsample_forward.1
$region0: #{downsample_forward.1}
  #allocation0 [shape = 'u32[]', space=smem, size = 0x4, offset = 0x4, fixed_abs, tag = 'smem constant byte address 0x4 - core index']
  #allocation1 [shape = 'u32[144,128]{1,0:T(1,128)}', space=vmem, size = 0x12000, scoped, tag = 'internal scratch']
  %s0 = inlined_call_operand.vmem [shape: bf16[2,2,4,192], index: 0, kind: input, shape index: {}]
  %s1 = inlined_call_operand.vmem [shape: f32[2,192], index: 1, kind: input, shape index: {}]
  %s2 = inlined_call_operand.vmem [shape: s32[1,192], index: 2, kind: input, shape index: {}]
  %s3 = inlined_call_operand.vmem [shape: bf16[8,36], index: 3, kind: input, shape index: {}]
  %s4 = inlined_call_operand.vmem [shape: f32[8,1], index: 4, kind: input, shape index: {}]
  %s5 = inlined_call_operand.vmem [shape: bf16[8,72], index: 5, kind: input, shape index: {}]
  %s6 = inlined_call_operand.vmem [shape: f32[8,1], index: 6, kind: input, shape index: {}]
  %s7 = inlined_call_operand.vmem [shape: f32[2,8,256], index: 7, kind: output, shape index: {}]
  %s8 = sld [smem:[#allocation0]]
  $region61: #{downsample_forward.1} parent=0
    _
  %s10 = ssub.s32 1, %s8
  %s11 = scalar_select 0, %s10, %s8
  loop: start=0, step=1, limit=6
  $region2: #{downsample_forward.1} parent=0 // loop_pre_header
    _
  $region3: #{downsample_forward.1} parent=0 // loop_header
    %s13 = sphi 0, %s17
    %p14 = scmp.ge.s32.totalorder %s13, 6
    %s20 = sphi 0, %s32
    %s21 = sphi 0, %s28
    %s22 = sphi 0, %s20
    %s23 = sphi 0, %s21
    %s24 = sphi 0, %s22
    %s25 = sphi 0, %s23
    %s37 = sphi 0, %s39
    %s40 = sphi 0, %s37
    %s41 = sphi 0, %s40
    %s57 = sphi 0, %s41
    %s61 = sphi 0, %s61
    %s63 = sphi 0, %s61
    %s64 = sphi 0, %s63
    %s78 = sphi 0, %s64
    %s82 = sphi 0, %s82
    %s84 = sphi 0, %s82
    %s85 = sphi 0, %s84
    %s99 = sphi 0, %s85
    %s103 = sphi 0, %s103
    %s105 = sphi 0, %s103
    %s106 = sphi 0, %s105
    %s120 = sphi 0, %s106
    %s124 = sphi 0, %s124
    %s126 = sphi 0, %s124
    %s127 = sphi 0, %s126
    %s141 = sphi 0, %s127
    %s145 = sphi 0, %s145
    %s147 = sphi 0, %s145
    %s148 = sphi 0, %s147
    %s162 = sphi 0, %s148
    %s166 = sphi 0, %s166
    %s168 = sphi 0, %s166
    %s169 = sphi 0, %s168
    %s183 = sphi 0, %s169
    %s191 = sphi 0, %s193
    %s194 = sphi 0, %s191
    %s195 = sphi 0, %s194
    %s211 = sphi 0, %s195
  $region4: #{downsample_forward.1} parent=0 // loop_header_branch
    %16 = sbr.rel (%p14) target = $region8
  $region5: #{downsample_forward.1} parent=0 // loop_body
    %s18 = ssub.s32 %s13, 1
    %s19 = ssub.s32 %s13, 2
    %s26 = sadd.s32 1, %s21
    %p27 = scmp.ge.s32.totalorder %s26, 2
    %s28 = scalar_select %p27, 0, %s26
    %s29 = sadd.s32 1, %s20
    %s30 = scalar_select %p27, %s29, %s20
    %p31 = scmp.ge.s32.totalorder %s30, 2
    %s32 = scalar_select %p31, 0, %s30
    %s33 = ssub.s32 %s20, %s32
    %s34 = ssub.s32 %s21, %s28
    %s35 = sor.u32 %s33, %s34
    %p36 = scmp.eq.s32.totalorder %s35, 0
    %s38 = sadd.s32 %s37, 1
    %s39 = scalar_select %p36, %s37, %s38
    %p42 = pneg %p36
    %p43 = scmp.eq.s32.totalorder %s13, 3
    %p44 = por %p42, %p43
    %p45 = scmp.ne.s32.totalorder %s37, %s40
    %p46 = scmp.eq.s32.totalorder %s13, 0
    %p47 = por %p45, %p46
    %p48 = scmp.ne.s32.totalorder %s37, %s40
    %p49 = scmp.eq.s32.totalorder %s18, 3
    %p50 = por %p48, %p49
    %p51 = scmp.ne.s32.totalorder %s40, %s41
    %p52 = scmp.eq.s32.totalorder %s18, 0
    %p53 = por %p51, %p52
    %p54 = scmp.ne.s32.totalorder %s40, %s41
    %p55 = scmp.eq.s32.totalorder %s19, 3
    %p56 = por %p54, %p55
    %p58 = scmp.ne.s32.totalorder %s41, %s57
    %p59 = scmp.eq.s32.totalorder %s19, 0
    %p60 = por %p58, %p59
    %s62 = sadd.s32 %s61, 1
    %p65 = scmp.eq.s32.totalorder %s13, 3
    %p66 = scmp.ne.s32.totalorder %s61, %s63
    %p67 = scmp.eq.s32.totalorder %s13, 0
    %p68 = por %p66, %p67
    %p69 = scmp.ne.s32.totalorder %s61, %s63
    %p70 = scmp.eq.s32.totalorder %s18, 3
    %p71 = por %p69, %p70
    %p72 = scmp.ne.s32.totalorder %s63, %s64
    %p73 = scmp.eq.s32.totalorder %s18, 0
    %p74 = por %p72, %p73
    %p75 = scmp.ne.s32.totalorder %s63, %s64
    %p76 = scmp.eq.s32.totalorder %s19, 3
    %p77 = por %p75, %p76
    %p79 = scmp.ne.s32.totalorder %s64, %s78
    %p80 = scmp.eq.s32.totalorder %s19, 0
    %p81 = por %p79, %p80
    %s83 = sadd.s32 %s82, 1
    %p86 = scmp.eq.s32.totalorder %s13, 3
    %p87 = scmp.ne.s32.totalorder %s82, %s84
    %p88 = scmp.eq.s32.totalorder %s13, 0
    %p89 = por %p87, %p88
    %p90 = scmp.ne.s32.totalorder %s82, %s84
    %p91 = scmp.eq.s32.totalorder %s18, 3
    %p92 = por %p90, %p91
    %p93 = scmp.ne.s32.totalorder %s84, %s85
    %p94 = scmp.eq.s32.totalorder %s18, 0
    %p95 = por %p93, %p94
    %p96 = scmp.ne.s32.totalorder %s84, %s85
    %p97 = scmp.eq.s32.totalorder %s19, 3
    %p98 = por %p96, %p97
    %p100 = scmp.ne.s32.totalorder %s85, %s99
    %p101 = scmp.eq.s32.totalorder %s19, 0
    %p102 = por %p100, %p101
    %s104 = sadd.s32 %s103, 1
    %p107 = scmp.eq.s32.totalorder %s13, 3
    %p108 = scmp.ne.s32.totalorder %s103, %s105
    %p109 = scmp.eq.s32.totalorder %s13, 0
    %p110 = por %p108, %p109
    %p111 = scmp.ne.s32.totalorder %s103, %s105
    %p112 = scmp.eq.s32.totalorder %s18, 3
    %p113 = por %p111, %p112
    %p114 = scmp.ne.s32.totalorder %s105, %s106
    %p115 = scmp.eq.s32.totalorder %s18, 0
    %p116 = por %p114, %p115
    %p117 = scmp.ne.s32.totalorder %s105, %s106
    %p118 = scmp.eq.s32.totalorder %s19, 3
    %p119 = por %p117, %p118
    %p121 = scmp.ne.s32.totalorder %s106, %s120
    %p122 = scmp.eq.s32.totalorder %s19, 0
    %p123 = por %p121, %p122
    %s125 = sadd.s32 %s124, 1
    %p128 = scmp.eq.s32.totalorder %s13, 3
    %p129 = scmp.ne.s32.totalorder %s124, %s126
    %p130 = scmp.eq.s32.totalorder %s13, 0
    %p131 = por %p129, %p130
    %p132 = scmp.ne.s32.totalorder %s124, %s126
    %p133 = scmp.eq.s32.totalorder %s18, 3
    %p134 = por %p132, %p133
    %p135 = scmp.ne.s32.totalorder %s126, %s127
    %p136 = scmp.eq.s32.totalorder %s18, 0
    %p137 = por %p135, %p136
    %p138 = scmp.ne.s32.totalorder %s126, %s127
    %p139 = scmp.eq.s32.totalorder %s19, 3
    %p140 = por %p138, %p139
    %p142 = scmp.ne.s32.totalorder %s127, %s141
    %p143 = scmp.eq.s32.totalorder %s19, 0
    %p144 = por %p142, %p143
    %s146 = sadd.s32 %s145, 1
    %p149 = scmp.eq.s32.totalorder %s13, 3
    %p150 = scmp.ne.s32.totalorder %s145, %s147
    %p151 = scmp.eq.s32.totalorder %s13, 0
    %p152 = por %p150, %p151
    %p153 = scmp.ne.s32.totalorder %s145, %s147
    %p154 = scmp.eq.s32.totalorder %s18, 3
    %p155 = por %p153, %p154
    %p156 = scmp.ne.s32.totalorder %s147, %s148
    %p157 = scmp.eq.s32.totalorder %s18, 0
    %p158 = por %p156, %p157
    %p159 = scmp.ne.s32.totalorder %s147, %s148
    %p160 = scmp.eq.s32.totalorder %s19, 3
    %p161 = por %p159, %p160
    %p163 = scmp.ne.s32.totalorder %s148, %s162
    %p164 = scmp.eq.s32.totalorder %s19, 0
    %p165 = por %p163, %p164
    %s167 = sadd.s32 %s166, 1
    %p170 = scmp.eq.s32.totalorder %s13, 3
    %p171 = scmp.ne.s32.totalorder %s166, %s168
    %p172 = scmp.eq.s32.totalorder %s13, 0
    %p173 = por %p171, %p172
    %p174 = scmp.ne.s32.totalorder %s166, %s168
    %p175 = scmp.eq.s32.totalorder %s18, 3
    %p176 = por %p174, %p175
    %p177 = scmp.ne.s32.totalorder %s168, %s169
    %p178 = scmp.eq.s32.totalorder %s18, 0
    %p179 = por %p177, %p178
    %p180 = scmp.ne.s32.totalorder %s168, %s169
    %p181 = scmp.eq.s32.totalorder %s19, 3
    %p182 = por %p180, %p181
    %p184 = scmp.ne.s32.totalorder %s169, %s183
    %p185 = scmp.eq.s32.totalorder %s19, 0
    %p186 = por %p184, %p185
    %s187 = ssub.s32 %s20, %s32
    %s188 = ssub.s32 %s21, %s28
    %s189 = sor.u32 %s187, %s188
    %p190 = scmp.eq.s32.totalorder %s189, 0
    %s192 = sadd.s32 %s191, 1
    %s193 = scalar_select %p190, %s191, %s192
    %p196 = pneg %p190
    %p197 = scmp.eq.s32.totalorder %s13, 3
    %p198 = por %p196, %p197
    %p199 = scmp.ne.s32.totalorder %s191, %s194
    %p200 = scmp.eq.s32.totalorder %s13, 0
    %p201 = por %p199, %p200
    %p202 = scmp.ne.s32.totalorder %s191, %s194
    %p203 = scmp.eq.s32.totalorder %s18, 3
    %p204 = por %p202, %p203
    %p205 = scmp.ne.s32.totalorder %s194, %s195
    %p206 = scmp.eq.s32.totalorder %s18, 0
    %p207 = por %p205, %p206
    %p208 = scmp.ne.s32.totalorder %s194, %s195
    %p209 = scmp.eq.s32.totalorder %s19, 3
    %p210 = por %p208, %p209
    %p212 = scmp.ne.s32.totalorder %s195, %s211
    %p213 = scmp.eq.s32.totalorder %s19, 0
    %p214 = por %p212, %p213
    %p215 = scmp.le.s32.totalorder 1, %s13
    %p216 = scmp.lt.s32.totalorder %s13, 5
    %p217 = pnand %p215, %p216
    %p218 = pneg %p217
    // Predicated region
    $region9: #{downsample_forward.1} parent=5 // pred_check
      _
    $region10: #{downsample_forward.1} parent=5 // pred_check_branch
      %220 = sbr.rel (%p217) target = $region12
    $region11: #{downsample_forward.1} parent=5 // pred_region
      %s221 = ssub.s32 %s13, 1
      // Predicated region
      $region13: #{downsample_forward.1} parent=11 // pred_check
        %p222 = pneg %p74
      $region14: #{downsample_forward.1} parent=11 // pred_check_branch
        %224 = sbr.rel (%p222) target = $region16
      $region15: #{downsample_forward.1} parent=11 // pred_region
        _
      $region16: #{downsample_forward.1} parent=11 // pred_fallthru
        _
      // Predicated region
      $region17: #{downsample_forward.1} parent=11 // pred_check
        %p225 = pneg %p95
      $region18: #{downsample_forward.1} parent=11 // pred_check_branch
        %227 = sbr.rel (%p225) target = $region20
      $region19: #{downsample_forward.1} parent=11 // pred_region
        _
      $region20: #{downsample_forward.1} parent=11 // pred_fallthru
        _
      // Predicated region
      $region21: #{downsample_forward.1} parent=11 // pred_check
        %p228 = pneg %p116
      $region22: #{downsample_forward.1} parent=11 // pred_check_branch
        %230 = sbr.rel (%p228) target = $region24
      $region23: #{downsample_forward.1} parent=11 // pred_region
        _
      $region24: #{downsample_forward.1} parent=11 // pred_fallthru
        _
      // Predicated region
      $region25: #{downsample_forward.1} parent=11 // pred_check
        %p231 = pneg %p137
      $region26: #{downsample_forward.1} parent=11 // pred_check_branch
        %233 = sbr.rel (%p231) target = $region28
      $region27: #{downsample_forward.1} parent=11 // pred_region
        _
      $region28: #{downsample_forward.1} parent=11 // pred_fallthru
        _
      // Predicated region
      $region29: #{downsample_forward.1} parent=11 // pred_check
        %p234 = pneg %p158
      $region30: #{downsample_forward.1} parent=11 // pred_check_branch
        %236 = sbr.rel (%p234) target = $region32
      $region31: #{downsample_forward.1} parent=11 // pred_region
        _
      $region32: #{downsample_forward.1} parent=11 // pred_fallthru
        _
      // Predicated region
      $region33: #{downsample_forward.1} parent=11 // pred_check
        %p237 = pneg %p179
      $region34: #{downsample_forward.1} parent=11 // pred_check_branch
        %239 = sbr.rel (%p237) target = $region36
      $region35: #{downsample_forward.1} parent=11 // pred_region
        _
      $region36: #{downsample_forward.1} parent=11 // pred_fallthru
        _
    $region12: #{downsample_forward.1} parent=5 // pred_fallthru
      _
    %p240 = scmp.lt.s32.totalorder %s13, 4
    // Predicated region
    $region37: #{downsample_forward.1} parent=5 // pred_check
      %p241 = pneg %p240
    $region38: #{downsample_forward.1} parent=5 // pred_check_branch
      %243 = sbr.rel (%p241) target = $region40
    $region39: #{downsample_forward.1} parent=5 // pred_region
      // Predicated region
      $region41: #{downsample_forward.1} parent=39 // pred_check
        %p244 = pneg %p47
      $region42: #{downsample_forward.1} parent=39 // pred_check_branch
        %246 = sbr.rel (%p244) target = $region44
      $region43: #{downsample_forward.1} parent=39 // pred_region
        %p247 = scmp.lt.s32.totalorder %s20, 1
        %s248 = scalar_select %p247, %s20, 1
        %p249 = scmp.lt.s32.totalorder %s21, 1
        %s250 = scalar_select %p249, %s21, 1
        %s251 = smul.addr %s250, 2
        %s252 = smul.addr %s248, 4
        %s253 = sadd.s32 %s251, %s252
        %s254 = smul.addr %s253, 2
        %s255 = scalar_lea.vmem %s0, %s254
      $region44: #{downsample_forward.1} parent=39 // pred_fallthru
        _
    $region40: #{downsample_forward.1} parent=5 // pred_fallthru
      _
    %p256 = scmp.le.s32.totalorder 1, %s13
    %p257 = scmp.lt.s32.totalorder %s13, 5
    %p258 = pnand %p256, %p257
    %p259 = pneg %p258
    // Predicated region
    $region45: #{downsample_forward.1} parent=5 // pred_check
      _
    $region46: #{downsample_forward.1} parent=5 // pred_check_branch
      %261 = sbr.rel (%p258) target = $region48
    $region47: #{downsample_forward.1} parent=5 // pred_region
      %s262 = ssub.s32 %s13, 1
      %p263 = scmp.lt.s32.totalorder %s22, 1
      %s264 = scalar_select %p263, %s22, 1
      %p265 = scmp.lt.s32.totalorder %s23, 1
      %s266 = scalar_select %p265, %s23, 1
      %s267 = smul.addr %s266, 2
      %s268 = smul.addr %s264, 4
      %s269 = sadd.s32 %s267, %s268
      %s270 = smul.addr %s269, 2
      %s271 = scalar_lea.vmem %s0, %s270
      %p272 = pneg %p53
      %p273 = pneg %p50
      %p274 = pneg %p74
      %p275 = pneg %p71
      %p276 = pneg %p95
      %p277 = pneg %p92
      %p278 = pneg %p116
      %p279 = pneg %p113
      %p280 = pneg %p137
      %p281 = pneg %p134
      %p282 = pneg %p158
      %p283 = pneg %p155
      %p284 = pneg %p179
      %p285 = pneg %p176
      %p286 = pneg %p207
      %p287 = pneg %p204
      %p288 = scmp.lt.s32.totalorder %s22, 1
      %s289 = scalar_select %p288, %s22, 1
      %p290 = scmp.lt.s32.totalorder %s23, 1
      %s291 = scalar_select %p290, %s23, 1
      %s292 = smul.addr %s289, 2
      %s293 = sadd.s32 %s291, %s292
      %s294 = smul.addr %s293, 8
      %s295 = scalar_lea.vmem %s7, %s294
      %p296 = scmp.lt.s32.totalorder %s22, 1
      %s297 = scalar_select %p296, %s22, 1
      %p298 = scmp.lt.s32.totalorder %s23, 1
      %s299 = scalar_select %p298, %s23, 1
      %s300 = smul.addr %s299, 2
      %s301 = smul.addr %s297, 4
      %s302 = sadd.s32 %s300, %s301
      %s303 = smul.addr %s302, 2
      %s304 = scalar_lea.vmem %s0, %s303
      %p305 = scmp.lt.s32.totalorder %s22, 1
      %s306 = scalar_select %p305, %s22, 1
      %p307 = scmp.lt.s32.totalorder %s23, 1
      %s308 = scalar_select %p307, %s23, 1
      %s309 = smul.addr %s306, 2
      %s310 = sadd.s32 %s308, %s309
      %s311 = smul.addr %s310, 8
      %s312 = scalar_lea.vmem %s7, %s311
      %v314 = vld [vmem:[%s1] sm:$0xf]
      %v315 = vld [vmem:[%s304] sm:$0xf]
      %v316 = vunpack.c.l.bf16 %v315
      %v317 = vld [vmem:[%s3] sm:$0xf]
      %v319 = vcombine.high %v316, %v316
      %vm321 = vcmask 1048064
      %322 = vrot.lane.b32.xlu0 %v316, 64
      %v323 = vpop.permute.xlu0 %322
      %v324 = vsel %vm321, %v323, %v319
      %325 = vrot.lane.b32.xlu0 %v324, 64
      %v326 = vpop.permute.xlu0 %325
      %v327 = vsel %vm321, %v326, %v323
      %v329 = vlaneseq
      %v330 = vshrl.u32 %v329, 7
      %v331 = vsub.s32 0, %v330
      %v332 = vrot.slane %v314, %v331
      %v333 = vlaneseq
      %v334 = vshrl.u32 %v333, 7
      %v335 = vsub.s32 2, %v334
      %v336 = vrot.slane %v314, %v335
      %v339 = vlaneseq
      %v340 = vshrl.u32 %v339, 7
      %v341 = vsub.s32 0, %v340
      %v342 = vrot.slane %v332, %v341
      %v343 = vlaneseq
      %v344 = vshrl.u32 %v343, 7
      %v345 = vsub.s32 0, %v344
      %v346 = vrot.slane %v336, %v345
      %349 = vrot.lane.b32.xlu0 %v342, 47
      %v350 = vpop.permute.xlu0 %349
      %351 = vrot.lane.b32.xlu0 %v346, 47
      %v352 = vpop.permute.xlu0 %351
      %vm353 = vcmask 384000
      %v354 = vsel %vm353, %v350, %v352
      %v357 = vmul.f32 %v324, %v350
      %v358 = vmul.f32 %v327, %v354
      %v359 = vlaneseq
      %v360 = vshrl.u32 %v359, 7
      %v361 = vsub.s32 1, %v360
      %v362 = vrot.slane %v314, %v361
      %v363 = vlaneseq
      %v364 = vshrl.u32 %v363, 7
      %v365 = vsub.s32 3, %v364
      %v366 = vrot.slane %v314, %v365
      %v369 = vlaneseq
      %v370 = vshrl.u32 %v369, 7
      %v371 = vsub.s32 1, %v370
      %v372 = vrot.slane %v362, %v371
      %v373 = vlaneseq
      %v374 = vshrl.u32 %v373, 7
      %v375 = vsub.s32 1, %v374
      %v376 = vrot.slane %v366, %v375
      %379 = vrot.lane.b32.xlu0 %v372, 49
      %v380 = vpop.permute.xlu0 %379
      %381 = vrot.lane.b32.xlu0 %v376, 49
      %v382 = vpop.permute.xlu0 %381
      %vm383 = vcmask 400384
      %v384 = vsel %vm383, %v380, %v382
      %v387 = vmul.f32 %v324, %v380
      %v388 = vmul.f32 %v327, %v384
      %389 = vrot.lane.b32.xlu0 %v342, 63
      %v390 = vpop.permute.xlu0 %389
      %391 = vrot.lane.b32.xlu0 %v346, 63
      %v392 = vpop.permute.xlu0 %391
      %vm393 = vcmask 515072
      %v394 = vsel %vm393, %v390, %v392
      %v397 = vmul.f32 %v324, %v390
      %v398 = vmul.f32 %v327, %v394
      %399 = vrot.lane.b32.xlu0 %v372, 1
      %v400 = vpop.permute.xlu0 %399
      %401 = vrot.lane.b32.xlu0 %v376, 1
      %v402 = vpop.permute.xlu0 %401
      %vm403 = vcmask 7168
      %v404 = vsel %vm403, %v400, %v402
      %v407 = vmul.f32 %v316, %v400
      %v408 = vmul.f32 %v324, %v404
      %409 = vrot.lane.b32.xlu0 %v342, 15
      %v410 = vpop.permute.xlu0 %409
      %411 = vrot.lane.b32.xlu0 %v346, 15
      %v412 = vpop.permute.xlu0 %411
      %vm413 = vcmask 121856
      %v414 = vsel %vm413, %v410, %v412
      %v417 = vmul.f32 %v316, %v410
      %v418 = vmul.f32 %v324, %v414
      %419 = vrot.lane.b32.xlu0 %v372, 17
      %v420 = vpop.permute.xlu0 %419
      %421 = vrot.lane.b32.xlu0 %v376, 17
      %v422 = vpop.permute.xlu0 %421
      %vm423 = vcmask 138240
      %v424 = vsel %vm423, %v420, %v422
      %v427 = vmul.f32 %v316, %v420
      %v428 = vmul.f32 %v324, %v424
      %v431 = vrot.slane %v324, 4
      %v432 = vrot.slane %v327, 4
      %433 = vrot.lane.b32.xlu0 %v431, 127
      %v434 = vpop.permute.xlu0 %433
      %435 = vrot.lane.b32.xlu0 %v432, 127
      %v436 = vpop.permute.xlu0 %435
      %vm437 = vcmask 1039360
      %v438 = vsel %vm437, %v434, %v436
      %443 = vrot.lane.b32.xlu0 %v387, 126
      %v444 = vpop.permute.xlu0 %443
      %445 = vrot.lane.b32.xlu0 %v388, 126
      %v446 = vpop.permute.xlu0 %445
      %vm447 = vcmask 1031168
      %v448 = vsel %vm447, %v444, %v446
      %v453 = vrot.slane %v397, 4
      %v454 = vrot.slane %v398, 4
      %455 = vrot.lane.b32.xlu0 %v453, 112
      %v456 = vpop.permute.xlu0 %455
      %457 = vrot.lane.b32.xlu0 %v454, 112
      %v458 = vpop.permute.xlu0 %457
      %vm459 = vcmask 916480
      %v460 = vsel %vm459, %v456, %v458
      %463 = vrot.lane.b32.xlu0 %v316, 47
      %v464 = vpop.permute.xlu0 %463
      %465 = vrot.lane.b32.xlu0 %v319, 47
      %v466 = vpop.permute.xlu0 %465
      %v467 = vsel %vm353, %v464, %v466
      %v472 = vrot.slane %v407, 4
      %v473 = vrot.slane %v408, 4
      %474 = vrot.lane.b32.xlu0 %v472, 46
      %v475 = vpop.permute.xlu0 %474
      %476 = vrot.lane.b32.xlu0 %v473, 46
      %v477 = vpop.permute.xlu0 %476
      %vm478 = vcmask 375808
      %v479 = vsel %vm478, %v475, %v477
      %484 = vrot.lane.b32.xlu0 %v417, 32
      %v485 = vpop.permute.xlu0 %484
      %486 = vrot.lane.b32.xlu0 %v418, 32
      %v487 = vpop.permute.xlu0 %486
      %vm488 = vcmask 261120
      %v489 = vsel %vm488, %v485, %v487
      %v492 = vrot.slane %v316, 4
      %493 = vrot.lane.b32.xlu0 %v492, 31
      %v494 = vpop.permute.xlu0 %493
      %495 = vrot.lane.b32.xlu0 %v431, 31
      %v496 = vpop.permute.xlu0 %495
      %vm497 = vcmask 252928
      %v498 = vsel %vm497, %v494, %v496
      %503 = vrot.lane.b32.xlu0 %v427, 30
      %v504 = vpop.permute.xlu0 %503
      %505 = vrot.lane.b32.xlu0 %v428, 30
      %v506 = vpop.permute.xlu0 %505
      %vm507 = vcmask 244736
      %v508 = vsel %vm507, %v504, %v506
      %vm511 = vcmask 1043456
      %v512 = vsel %vm511, %v357, %v438
      %v513 = vsel %vm511, %v358, %v436
      %v514 = vsel %vm511, %v448, %v460
      %v515 = vsel %vm511, %v446, %v458
      %v516 = vsel %vm511, %v464, %v475
      %v517 = vsel %vm511, %v467, %v479
      %v518 = vsel %vm511, %v485, %v494
      %v519 = vsel %vm511, %v489, %v498
      %v520 = vpack.c.bf16 %v514, %v512
      %v521 = vpack.c.bf16 %v515, %v513
      %v522 = vpack.c.bf16 %v518, %v516
      %v523 = vpack.c.bf16 %v519, %v517
      %v524 = vpack.c.bf16 %v504, %v504
      %v525 = vpack.c.bf16 %v508, %v508
      %v526 = vld [vmem:[%s4] sm:$0xff]
      %528 = vset.pattern.permute.xlu0 0
      %529 = vperm.xlu0 %528, %v526
      %v530 = vpop.permute.xlu0 %529
      %538 = vrot.lane.b32.xlu0 %v520, 81
      %v539 = vpop.permute.xlu0 %538
      %540 = vrot.lane.b32.xlu0 %v521, 81
      %v541 = vpop.permute.xlu0 %540
      %542 = vrot.lane.b32.xlu0 %v522, 81
      %v543 = vpop.permute.xlu0 %542
      %544 = vrot.lane.b32.xlu0 %v523, 81
      %v545 = vpop.permute.xlu0 %544
      %546 = vrot.lane.b32.xlu0 %v524, 81
      %v547 = vpop.permute.xlu0 %546
      %548 = vrot.lane.b32.xlu0 %v525, 81
      %v549 = vpop.permute.xlu0 %548
      %vm550 = vcmask 662528
      %v551 = vsel %vm550, %v539, %v541
      %v552 = vsel %vm550, %v543, %v545
      %v553 = vsel %vm550, %v547, %v549
      %vm558 = vcmask 293888
      %v560 = vsel %vm558, %v317, 0
      %vm562 = vcmask 1041408
      %v564 = vsel %vm562, %v553, 0
      %v567 = vsel %vm562, %v549, 0
      %569 = vmatprep.subr.bf16.mxu0 %v541
      %570 = vmatpush1.bf16.msra.mxu0 %v551
      %571 = vmatprep.subr.bf16.mxu0 %v545
      %572 = vmatpush1.bf16.msra.mxu0 %v552
      %573 = vmatprep.subr.bf16.mxu0 %v567
      %574 = vmatpush1.bf16.msra.mxu0 %v564
      %575 = vmatprep.subr.bf16.mxu0 0
      %576 = vmatpush1.bf16.msra.mxu0 0
      %577 = vmatprep.subr.bf16.mxu0 0
      %578 = vmatpush1.bf16.msra.mxu0 0
      %579 = vmatprep.subr.bf16.mxu0 0
      %580 = vmatpush1.bf16.msra.mxu0 0
      %581 = vmatprep.subr.bf16.mxu0 0
      %582 = vmatpush1.bf16.msra.mxu0 0
      %583 = vmatprep.subr.bf16.mxu0 0
      %584 = vmatpush1.bf16.msra.mxu0 0
      %585 = vmatprep.subr.bf16.mxu0 0
      %586 = vmatpush1.bf16.msra.mxu0 0
      %587 = vmatprep.subr.bf16.mxu0 0
      %588 = vmatpush1.bf16.msra.mxu0 0
      %589 = vmatprep.subr.bf16.mxu0 0
      %590 = vmatpush1.bf16.msra.mxu0 0
      %591 = vmatprep.subr.bf16.mxu0 0
      %592 = vmatpush1.bf16.msra.mxu0 0
      %593 = vmatprep.subr.bf16.mxu0 0
      %594 = vmatpush1.bf16.msra.mxu0 0
      %595 = vmatprep.subr.bf16.mxu0 0
      %596 = vmatpush1.bf16.msra.mxu0 0
      %597 = vmatprep.subr.bf16.mxu0 0
      %598 = vmatpush1.bf16.msra.mxu0 0
      %599 = vmatprep.subr.bf16.mxu0 0
      %600 = vmatpush1.bf16.msra.mxu0 0
      %601 = vmatprep.mubr.bf16.mxu0 0
      %602 = vmatmul.mubr.bf16.gmra.mrb[0].mxu0 %v560
      %v603 = vpop.f32.mrb[0].mxu0
      %v604 = vadd.f32 %v530, %v603
      %v605 = vpop.f32.mrb[0].mxu0
      %v606 = vadd.f32 %v530, %v605
      %v607 = vpop.f32.mrb[0].mxu0
      %v608 = vpop.f32.mrb[0].mxu0
      %609 = vdwg.mxu0
      %v610 = vmax.f32 %v604, 0.0
      %v611 = vmax.f32 %v606, 0.0
      %s612 = smul.u32 %s23, 8
      %v613 = vld [vmem:[%s2] sm:$0x3]
      %v614 = vstv %s612
      %v615 = vadd.s32 %v614, %v613
      %v616 = vsub.s32 %v615, 2
      %vm617 = vcmp.ge.s32.totalorder %v616, 0
      %vm618 = vcmp.lt.s32.totalorder %v616, 16
      %vm619 = vmand %vm617, %vm618
      %v620 = vsel %vm619, 1, 0
      %v621 = vlaneseq
      %v622 = vshrl.u32 %v621, 7
      %v623 = vsub.s32 0, %v622
      %v624 = vrot.slane %v620, %v623
      %v625 = vlaneseq
      %v626 = vshrl.u32 %v625, 7
      %v627 = vsub.s32 1, %v626
      %v628 = vrot.slane %v620, %v627
      %vm629 = vcmp.eq.s32.totalorder %v624, 1
      %vm630 = vcmp.eq.s32.totalorder %v628, 1
      %v631 = vsel %vm629, %v610, 0.0
      %v632 = vsel %vm630, %v611, 0.0
      %v633 = vld [vmem:[%s5] sm:$0xf]
      %634 = vrot.lane.b32.xlu0 %v631, 64
      %v635 = vpop.permute.xlu0 %634
      %v636 = vsel %vm321, %v635, %v632
      %637 = vrot.lane.b32.xlu0 %v636, 64
      %v638 = vpop.permute.xlu0 %637
      %v639 = vsel %vm321, %v638, %v635
      %v640 = vmul.f32 %v636, %v350
      %v641 = vmul.f32 %v639, %v354
      %v642 = vmul.f32 %v636, %v380
      %v643 = vmul.f32 %v639, %v384
      %v644 = vmul.f32 %v636, %v390
      %v645 = vmul.f32 %v639, %v394
      %v646 = vmul.f32 %v631, %v400
      %v647 = vmul.f32 %v636, %v404
      %v648 = vmul.f32 %v631, %v410
      %v649 = vmul.f32 %v636, %v414
      %v650 = vmul.f32 %v631, %v420
      %v651 = vmul.f32 %v636, %v424
      %654 = vrot.lane.b32.xlu0 %v636, 127
      %v655 = vpop.permute.xlu0 %654
      %656 = vrot.lane.b32.xlu0 %v639, 127
      %v657 = vpop.permute.xlu0 %656
      %v658 = vsel %vm437, %v655, %v657
      %663 = vrot.lane.b32.xlu0 %v642, 126
      %v664 = vpop.permute.xlu0 %663
      %665 = vrot.lane.b32.xlu0 %v643, 126
      %v666 = vpop.permute.xlu0 %665
      %v667 = vsel %vm447, %v664, %v666
      %672 = vrot.lane.b32.xlu0 %v644, 112
      %v673 = vpop.permute.xlu0 %672
      %674 = vrot.lane.b32.xlu0 %v645, 112
      %v675 = vpop.permute.xlu0 %674
      %v676 = vsel %vm459, %v673, %v675
      %681 = vrot.lane.b32.xlu0 %v631, 47
      %v682 = vpop.permute.xlu0 %681
      %683 = vrot.lane.b32.xlu0 %v632, 47
      %v684 = vpop.permute.xlu0 %683
      %v685 = vsel %vm353, %v682, %v684
      %690 = vrot.lane.b32.xlu0 %v646, 46
      %v691 = vpop.permute.xlu0 %690
      %692 = vrot.lane.b32.xlu0 %v647, 46
      %v693 = vpop.permute.xlu0 %692
      %v694 = vsel %vm478, %v691, %v693
      %699 = vrot.lane.b32.xlu0 %v648, 32
      %v700 = vpop.permute.xlu0 %699
      %701 = vrot.lane.b32.xlu0 %v649, 32
      %v702 = vpop.permute.xlu0 %701
      %v703 = vsel %vm488, %v700, %v702
      %706 = vrot.lane.b32.xlu0 %v631, 31
      %v707 = vpop.permute.xlu0 %706
      %708 = vrot.lane.b32.xlu0 %v636, 31
      %v709 = vpop.permute.xlu0 %708
      %v710 = vsel %vm497, %v707, %v709
      %715 = vrot.lane.b32.xlu0 %v650, 30
      %v716 = vpop.permute.xlu0 %715
      %717 = vrot.lane.b32.xlu0 %v651, 30
      %v718 = vpop.permute.xlu0 %717
      %v719 = vsel %vm507, %v716, %v718
      %v722 = vpack.c.bf16 %v658, %v640
      %v723 = vpack.c.bf16 %v657, %v641
      %v724 = vpack.c.bf16 %v676, %v667
      %v725 = vpack.c.bf16 %v675, %v666
      %v726 = vpack.c.bf16 %v691, %v682
      %v727 = vpack.c.bf16 %v694, %v685
      %v728 = vpack.c.bf16 %v707, %v700
      %v729 = vpack.c.bf16 %v710, %v703
      %v730 = vpack.c.bf16 %v716, %v716
      %v731 = vpack.c.bf16 %v719, %v719
      %v732 = vld [vmem:[%s6] sm:$0xff]
      %734 = vset.pattern.permute.xlu0 0
      %735 = vperm.xlu0 %734, %v732
      %v736 = vpop.permute.xlu0 %735
      %748 = vrot.lane.b32.xlu0 %v722, 49
      %v749 = vpop.permute.xlu0 %748
      %750 = vrot.lane.b32.xlu0 %v723, 49
      %v751 = vpop.permute.xlu0 %750
      %752 = vrot.lane.b32.xlu0 %v724, 49
      %v753 = vpop.permute.xlu0 %752
      %754 = vrot.lane.b32.xlu0 %v725, 49
      %v755 = vpop.permute.xlu0 %754
      %756 = vrot.lane.b32.xlu0 %v726, 49
      %v757 = vpop.permute.xlu0 %756
      %758 = vrot.lane.b32.xlu0 %v727, 49
      %v759 = vpop.permute.xlu0 %758
      %760 = vrot.lane.b32.xlu0 %v728, 49
      %v761 = vpop.permute.xlu0 %760
      %762 = vrot.lane.b32.xlu0 %v729, 49
      %v763 = vpop.permute.xlu0 %762
      %764 = vrot.lane.b32.xlu0 %v730, 49
      %v765 = vpop.permute.xlu0 %764
      %766 = vrot.lane.b32.xlu0 %v731, 49
      %v767 = vpop.permute.xlu0 %766
      %vm768 = vcmask 400384
      %v769 = vsel %vm768, %v749, %v751
      %v770 = vsel %vm768, %v753, %v755
      %v771 = vsel %vm768, %v757, %v759
      %v772 = vsel %vm768, %v761, %v763
      %v773 = vsel %vm768, %v765, %v767
      %vm778 = vcmask 588800
      %v780 = vsel %vm778, %v633, 0
      %v783 = vsel %vm511, %v773, 0
      %785 = vmatprep.subr.bf16.mxu0 0
      %786 = vmatpush1.bf16.msra.mxu0 %v769
      %787 = vmatprep.subr.bf16.mxu0 0
      %788 = vmatpush1.bf16.msra.mxu0 %v770
      %789 = vmatprep.subr.bf16.mxu0 0
      %790 = vmatpush1.bf16.msra.mxu0 %v771
      %791 = vmatprep.subr.bf16.mxu0 0
      %792 = vmatpush1.bf16.msra.mxu0 %v772
      %793 = vmatprep.subr.bf16.mxu0 0
      %794 = vmatpush1.bf16.msra.mxu0 %v783
      %795 = vmatprep.subr.bf16.mxu0 0
      %796 = vmatpush1.bf16.msra.mxu0 0
      %797 = vmatprep.subr.bf16.mxu0 0
      %798 = vmatpush1.bf16.msra.mxu0 0
      %799 = vmatprep.subr.bf16.mxu0 0
      %800 = vmatpush1.bf16.msra.mxu0 0
      %801 = vmatprep.subr.bf16.mxu0 0
      %802 = vmatpush1.bf16.msra.mxu0 0
      %803 = vmatprep.subr.bf16.mxu0 0
      %804 = vmatpush1.bf16.msra.mxu0 0
      %805 = vmatprep.subr.bf16.mxu0 0
      %806 = vmatpush1.bf16.msra.mxu0 0
      %807 = vmatprep.subr.bf16.mxu0 0
      %808 = vmatpush1.bf16.msra.mxu0 0
      %809 = vmatprep.subr.bf16.mxu0 0
      %810 = vmatpush1.bf16.msra.mxu0 0
      %811 = vmatprep.subr.bf16.mxu0 0
      %812 = vmatpush1.bf16.msra.mxu0 0
      %813 = vmatprep.subr.bf16.mxu0 0
      %814 = vmatpush1.bf16.msra.mxu0 0
      %815 = vmatprep.subr.bf16.mxu0 0
      %816 = vmatpush1.bf16.msra.mxu0 0
      %817 = vmatprep.mubr.bf16.mxu0 0
      %818 = vmatmul.mubr.bf16.gmra.mrb[0].mxu0 %v780
      %v819 = vpop.f32.mrb[0].mxu0
      %v820 = vadd.f32 %v736, %v819
      %v821 = vpop.f32.mrb[0].mxu0
      %v822 = vpop.f32.mrb[0].mxu0
      %v823 = vpop.f32.mrb[0].mxu0
      %824 = vdwg.mxu0
      %v825 = vmax.f32 %v820, 0.0
      %826 = vst [vmem:[%s312] sm:$0xff] %v825
      %p827 = scmp.lt.s32.totalorder %s22, 1
      %s828 = scalar_select %p827, %s22, 1
      %p829 = scmp.lt.s32.totalorder %s23, 1
      %s830 = scalar_select %p829, %s23, 1
      %s831 = smul.addr %s828, 2
      %s832 = sadd.s32 %s830, %s831
      %s833 = smul.addr %s832, 8
      %s834 = scalar_lea.vmem %s7, %s833
      // Predicated region
      $region49: #{downsample_forward.1} parent=47 // pred_check
        %p835 = pneg %p204
      $region50: #{downsample_forward.1} parent=47 // pred_check_branch
        %837 = sbr.rel (%p835) target = $region52
      $region51: #{downsample_forward.1} parent=47 // pred_region
        _
      $region52: #{downsample_forward.1} parent=47 // pred_fallthru
        _
    $region48: #{downsample_forward.1} parent=5 // pred_fallthru
      _
    %p838 = scmp.le.s32.totalorder 2, %s13
    // Predicated region
    $region53: #{downsample_forward.1} parent=5 // pred_check
      %p839 = pneg %p838
    $region54: #{downsample_forward.1} parent=5 // pred_check_branch
      %841 = sbr.rel (%p839) target = $region56
    $region55: #{downsample_forward.1} parent=5 // pred_region
      %s842 = ssub.s32 %s13, 2
      // Predicated region
      $region57: #{downsample_forward.1} parent=55 // pred_check
        %p843 = pneg %p210
      $region58: #{downsample_forward.1} parent=55 // pred_check_branch
        %845 = sbr.rel (%p843) target = $region60
      $region59: #{downsample_forward.1} parent=55 // pred_region
        %p846 = scmp.lt.s32.totalorder %s24, 1
        %s847 = scalar_select %p846, %s24, 1
        %p848 = scmp.lt.s32.totalorder %s25, 1
        %s849 = scalar_select %p848, %s25, 1
        %s850 = smul.addr %s847, 2
        %s851 = sadd.s32 %s849, %s850
        %s852 = smul.addr %s851, 8
        %s853 = scalar_lea.vmem %s7, %s852
      $region60: #{downsample_forward.1} parent=55 // pred_fallthru
        _
    $region56: #{downsample_forward.1} parent=5 // pred_fallthru
      _
  $region6: #{downsample_forward.1} parent=0 // loop_footer
    %s17 = sadd.s32 1, %s13
  $region7: #{downsample_forward.1} parent=0 // loop_footer_branch
    %12 = sbr.rel target = $region3
  $region8: #{downsample_forward.1} parent=0 // loop_exit
    _

</llo_original>
